<compile_context>
chip_gen: v5e
topology: v5e:2x2
jax: 0.10.0
libtpu: 0.0.40
codegen_flags: <defaults>
</compile_context>

<pallas_src>
import functools

import jax
import jax.numpy as jnp
from jax import lax
from jax.experimental import pallas as pl
from jax.experimental.pallas import tpu as pltpu


# ---------------------------------------------------------------------------
# Hardware / sizing helpers
# ---------------------------------------------------------------------------

def _tpu_vmem_and_cores():
    """Best-effort (VMEM bytes per core, TensorCores per device); conservative defaults."""
    vmem_bytes = 64 * 1024 * 1024          # v7x per-TC VMEM (smallest of v5e/v6e/v7x)
    num_cores = 1
    try:
        vmem_bytes = int(pltpu.get_tpu_info().vmem_capacity_bytes)
    except Exception:
        pass
    try:
        dev = jax.devices()[0]
        num_cores = int(getattr(dev, "num_cores", 1) or 1)
        if num_cores <= 1 and "v7" in str(getattr(dev, "device_kind", "")).lower():
            num_cores = 2                  # v7x: 2 TensorCores behind one device
    except Exception:
        pass
    return vmem_bytes, num_cores


def _largest_divisor_leq(n, cap):
    cap = max(1, min(n, int(cap)))
    for d in range(cap, 0, -1):
        if n % d == 0:
            return d
    return 1


# ---------------------------------------------------------------------------
# Kernels
# ---------------------------------------------------------------------------

def _daft_fused_kernel(fm_ref, haux_ref, w1pt_ref, w2t_ref, out_ref, *, inv_spatial):
    # fm_ref:   (Bblk, C, Sp)   feature-map slab; Sp lane-dense (mult. of 128, zero padded)
    # haux_ref: (Bblk, 1, bott) precomputed x_aux @ W1[:, C:].T  (f32)
    # w1pt_ref: (C, bott)       W1[:, :C].T   (f32)
    # w2t_ref:  (bott, 2C)      W2.T          (f32)
    # out_ref:  (Bblk, C, Sp)
    bb, C, sp = fm_ref.shape

    # ---- global average pool over the spatial (lane) axis, f32 accumulation ----
    # Chunked over lane slices so low-precision inputs never materialize a full-slab
    # f32 copy and the pooled read never pins the whole slab live in vregs.
    lanes = sp // 128
    max_lanes = max(1, (512 * 1024) // (bb * C * 128 * 4))   # ~512 KiB of f32 per chunk
    chunk_lanes = 1
    for d in range(1, lanes + 1):
        if lanes % d == 0 and d <= max_lanes:
            chunk_lanes = d
    chunk = 128 * chunk_lanes
    n_chunks = sp // chunk

    if n_chunks == 1:
        sums = jnp.sum(fm_ref[...].astype(jnp.float32), axis=2)          # (bb, C)
    else:
        def body(i, acc):
            off = pl.multiple_of(i * chunk, chunk)
            c = fm_ref[:, :, pl.ds(off, chunk)].astype(jnp.float32)
            return acc + jnp.sum(c, axis=2)
        sums = lax.fori_loop(0, n_chunks, body,
                             jnp.zeros((bb, C), jnp.float32),
                             unroll=n_chunks <= 8)
    pooled = sums * inv_spatial                                          # divide by true S

    # ---- tiny aux MLP (f32): aux_base -> ReLU -> aux_out ----
    h = jnp.dot(pooled, w1pt_ref[...], preferred_element_type=jnp.float32)
    h = h + haux_ref[:, 0, :].astype(jnp.float32)                        # (bb, bott)
    h = jnp.maximum(h, 0.0)                                              # ReLU
    att = jnp.dot(h, w2t_ref[...], preferred_element_type=jnp.float32)   # (bb, 2C)

    # ---- FiLM modulation (linear activation), streamed from VMEM ----
    # fm_ref is re-read here (not reused from the pooling read) so the slab does not
    # stay live in vregs across the pool -> MLP -> modulate chain.
    # TODO(synk): modulation runs in the feature-map dtype; for bf16/fp16 inputs this
    # differs slightly from the f32-broadcast PyTorch reference (exact for f32).
    scale = att[:, :C].astype(out_ref.dtype)[:, :, None]                 # (bb, C, 1)
    shift = att[:, C:].astype(out_ref.dtype)[:, :, None]                 # (bb, C, 1)
    out_ref[...] = scale * fm_ref[...] + shift


def _film_kernel(fm_ref, scale_ref, shift_ref, out_ref):
    # Spatially-chunked FiLM-only kernel (fallback path).
    out_ref[...] = scale_ref[...] * fm_ref[...] + shift_ref[...]


# ---------------------------------------------------------------------------
# Wrapper
# ---------------------------------------------------------------------------

def daft_forward(feature_map, x_aux, w1, w2, *, block_b=None, force_split=False):
    """DAFT forward.

    feature_map: (B, C, D, H, W); x_aux: (B, A);
    w1: aux_base weight (bott, C + A); w2: aux_out weight (2C, bott).
    """
    B, C, D, H, W = feature_map.shape
    S = D * H * W
    bott = w1.shape[0]
    dtype = feature_map.dtype
    itemsize = jnp.dtype(dtype).itemsize

    # Lane-dense spatial axis: pad S up to a multiple of 128 so the writeback uses
    # unmasked full-lane stores; padded zeros contribute nothing to the pooled sum
    # and the padded output lanes are sliced off below.
    Sp = max(128, ((S + 127) // 128) * 128)
    fm = feature_map.reshape(B, C, S)
    if Sp != S:
        fm = jnp.pad(fm, ((0, 0), (0, 0), (0, Sp - S)))

    # Split aux_base weight: pooled-feature columns vs. x_aux columns; keep MLP math f32.
    w1f = w1.astype(jnp.float32)
    w2f = w2.astype(jnp.float32)
    w1p_t = jnp.transpose(w1f[:, :C])                                    # (C, bott)
    w2_t = jnp.transpose(w2f)                                            # (bott, 2C)
    # Hoisted aux-side half of the first Linear (independent of the feature map).
    h_aux = jnp.dot(x_aux.astype(jnp.float32), jnp.transpose(w1f[:, C:]))  # (B, bott)

    # ---------------- generation-aware sizing ----------------
    vmem_bytes, num_cores = _tpu_vmem_and_cores()
    vmem_limit = int(max(16 * 1024 * 1024, min(0.45 * vmem_bytes, 96 * 1024 * 1024)))
    usable = int(0.8 * vmem_limit) - (1 << 20)        # headroom for weights / intermediates
    per_b = C * Sp * itemsize                          # bytes of one batch row of the slab
    target_slab = 2 * 1024 * 1024                      # ~2 MiB/step -> several pipelined steps
    vmem_b_cap = usable // (4 * per_b)                 # 2x in + 2x out double buffers

    if (not force_split) and vmem_b_cap >= 1:
        # ---- fused path: pool + MLP + FiLM in a single pass over the feature map ----
        if block_b is None:
            cap = min(vmem_b_cap, max(1, target_slab // per_b))
            if num_cores > 1 and B >= num_cores:
                cap = min(cap, B // num_cores)         # give every TensorCore work (v7x)
            desired_steps = max(4, num_cores)
            if B >= desired_steps:
                cap = min(cap, B // desired_steps)     # keep >=4 pipelined grid steps
            block_b = _largest_divisor_leq(B, cap)
        assert B % block_b == 0
        grid_b = B // block_b
        # Default double-buffering is enough once there are several grid steps; deeper
        # pipelining (pl.Buffered(3)) only pays if DMA is still exposed after this.

        kernel = functools.partial(_daft_fused_kernel, inv_spatial=1.0 / float(S))
        out = pl.pallas_call(
            kernel,
            out_shape=jax.ShapeDtypeStruct((B, C, Sp), dtype),
            grid_spec=pltpu.PrefetchScalarGridSpec(
                num_scalar_prefetch=0,
                grid=(grid_b,),
                in_specs=[
                    pl.BlockSpec((block_b, C, Sp), lambda b: (b, 0, 0)),
                    pl.BlockSpec((block_b, 1, bott), lambda b: (b, 0, 0)),
                    pl.BlockSpec((C, bott), lambda b: (0, 0)),
                    pl.BlockSpec((bott, 2 * C), lambda b: (0, 0)),
                ],
                out_specs=pl.BlockSpec((block_b, C, Sp), lambda b: (b, 0, 0)),
            ),
            compiler_params=pltpu.CompilerParams(
                dimension_semantics=("parallel",),
                vmem_limit_bytes=vmem_limit,
            ),
        )(fm, h_aux.reshape(B, 1, bott), w1p_t, w2_t)
    else:
        # ---- fallback: one (C, Sp) slab does not fit the VMEM budget (or forced). ----
        # Pool + tiny MLP in XLA (one extra roofline-bound read of fm), then a
        # spatially-chunked Pallas FiLM kernel with lane-dense stores.
        pooled = jnp.mean(feature_map.astype(jnp.float32), axis=(2, 3, 4))   # (B, C)
        h = jnp.maximum(jnp.dot(pooled, w1p_t) + h_aux, 0.0)
        att = jnp.dot(h, w2_t)                                               # (B, 2C)
        scale = att[:, :C].astype(dtype).reshape(B, C, 1)
        shift = att[:, C:].astype(dtype).reshape(B, C, 1)

        lanes = Sp // 128
        cap_bytes = max(128 * C * itemsize, min(target_slab, max(1, usable) // 4))
        cap_lanes = max(1, cap_bytes // (128 * C * itemsize))
        s_blk = 128 * _largest_divisor_leq(lanes, cap_lanes)

        out = pl.pallas_call(
            _film_kernel,
            out_shape=jax.ShapeDtypeStruct((B, C, Sp), dtype),
            grid_spec=pltpu.PrefetchScalarGridSpec(
                num_scalar_prefetch=0,
                grid=(B, Sp // s_blk),
                in_specs=[
                    pl.BlockSpec((1, C, s_blk), lambda b, s: (b, 0, s)),
                    pl.BlockSpec((1, C, 1), lambda b, s: (b, 0, 0)),
                    pl.BlockSpec((1, C, 1), lambda b, s: (b, 0, 0)),
                ],
                out_specs=pl.BlockSpec((1, C, s_blk), lambda b, s: (b, 0, s)),
            ),
            compiler_params=pltpu.CompilerParams(
                dimension_semantics=("parallel", "parallel"),
                vmem_limit_bytes=vmem_limit,
            ),
        )(fm, scale, shift)

    if Sp != S:
        out = out[:, :, :S]
    return out.reshape(B, C, D, H, W)


def daft_reference(feature_map, x_aux, w1, w2):
    """Plain-JAX reference matching the PyTorch forward."""
    C = feature_map.shape[1]
    pooled = feature_map.mean(axis=(2, 3, 4))                 # AdaptiveAvgPool3d(1)
    squeeze = jnp.concatenate([pooled, x_aux], axis=1)        # (B, C+A)
    h = jnp.maximum(squeeze @ w1.T, 0.0)                      # aux_base + ReLU
    att = h @ w2.T                                            # aux_out -> (B, 2C)
    scale = att[:, :C][:, :, None, None, None]
    shift = att[:, C:][:, :, None, None, None]
    return scale * feature_map + shift                        # linear activation


if __name__ == "__main__":
    # Module config: in_channels = out_channels = 8, ndim_non_img = 15,
    # embedding_factor = 7  ->  bottleneck_dim = (15 + 8) // 7 = 3, film_dims = 16.
    A = 15
    C = 8
    bott = (A + C) // 7
    assert bott > 0

    key = jax.random.PRNGKey(0)
    k_fm, k_aux, k_w1, k_w2, k_fm2 = jax.random.split(key, 5)

    # Deterministic synthetic weights (shapes match nn.Linear(., ., bias=False).weight).
    w1 = jax.random.normal(k_w1, (bott, A + C), dtype=jnp.float32) * 0.2   # aux_base
    w2 = jax.random.normal(k_w2, (2 * C, bott), dtype=jnp.float32) * 0.2   # aux_out
    x_aux = jax.random.normal(k_aux, (2, A), dtype=jnp.float32)

    fused_fwd = jax.jit(daft_forward)
    split_fwd = jax.jit(functools.partial(daft_forward, force_split=True))

    ok = True

    # 1) lane-aligned spatial size (4*8*8 = 256), fused single-pass kernel.
    fm1 = jax.random.normal(k_fm, (2, C, 4, 8, 8), dtype=jnp.float32)
    out1 = jax.block_until_ready(fused_fwd(fm1, x_aux, w1, w2))
    ref1 = daft_reference(fm1, x_aux, w1, w2)
    ok &= bool(jnp.allclose(out1, ref1, rtol=1e-5, atol=1e-5))

    # 2) ragged spatial size (3*5*7 = 105 -> padded to 128 lanes), fused kernel.
    fm2 = jax.random.normal(k_fm2, (2, C, 3, 5, 7), dtype=jnp.float32)
    out2 = jax.block_until_ready(fused_fwd(fm2, x_aux, w1, w2))
    ref2 = daft_reference(fm2, x_aux, w1, w2)
    ok &= bool(jnp.allclose(out2, ref2, rtol=1e-5, atol=1e-5))

    # 3) spatially-chunked fallback (used when a (C, S) slab would not fit VMEM).
    out3 = jax.block_until_ready(split_fwd(fm1, x_aux, w1, w2))
    ok &= bool(jnp.allclose(out3, ref1, rtol=1e-5, atol=1e-5))

    if not ok:
        raise AssertionError("Pallas DAFT kernel does not match JAX reference")
    print("KERNEL_OK")
</pallas_src>

<mosaic_0001>
module attributes {stable_mosaic.version = 11 : i64} {
  func.func @_daft_fused_kernel(%arg0: i32, %arg1: memref<2x8x256xf32, #tpu.memory_space<vmem>>, %arg2: memref<2x1x3xf32, #tpu.memory_space<vmem>>, %arg3: memref<8x3xf32, #tpu.memory_space<vmem>>, %arg4: memref<3x16xf32, #tpu.memory_space<vmem>>, %arg5: memref<2x8x256xf32, #tpu.memory_space<vmem>>) attributes {dimension_semantics = [#tpu.dimension_semantics<parallel>], iteration_bounds = array<i64: 1>, scalar_prefetch = 0 : i64, scratch_operands = 0 : i64, tpu.core_type = #tpu.core_type<tc>, window_params = [{transform_indices = @transform_0, window_bounds = array<i64: 2, 8, 256>}, {transform_indices = @transform_1, window_bounds = array<i64: 2, 1, 3>}, {pipeline_mode = #tpu.pipeline_mode<synchronous>, transform_indices = @transform_2, window_bounds = array<i64: 8, 3>}, {pipeline_mode = #tpu.pipeline_mode<synchronous>, transform_indices = @transform_3, window_bounds = array<i64: 3, 16>}, {transform_indices = @transform_4, window_bounds = array<i64: 2, 8, 256>}]} {
    %c0 = arith.constant 0 : index
    %c0_0 = arith.constant 0 : index
    %c0_1 = arith.constant 0 : index
    %0 = vector.load %arg1[%c0, %c0_0, %c0_1] : memref<2x8x256xf32, #tpu.memory_space<vmem>>, vector<2x8x256xf32>
    %cst = arith.constant dense<0.000000e+00> : vector<2x8xf32>
    %1 = vector.multi_reduction <add>, %0, %cst [2] : vector<2x8x256xf32> to vector<2x8xf32>
    %cst_2 = arith.constant 3.906250e-03 : f32
    %2 = vector.broadcast %cst_2 : f32 to vector<2x8xf32>
    %3 = arith.mulf %1, %2 : vector<2x8xf32>
    %c0_3 = arith.constant 0 : index
    %c0_4 = arith.constant 0 : index
    %4 = vector.load %arg3[%c0_3, %c0_4] : memref<8x3xf32, #tpu.memory_space<vmem>>, vector<8x3xf32>
    %cst_5 = arith.constant dense<0.000000e+00> : vector<2x3xf32>
    %5 = tpu.matmul %3, %4, %cst_5 {dimension_numbers = #tpu.dot_dimension_numbers<[1], [0], [0], [1], [0, 0, 1, 1], [], []>} : vector<2x8xf32>, vector<8x3xf32>, vector<2x3xf32> -> vector<2x3xf32>
    %c0_6 = arith.constant 0 : index
    %c0_7 = arith.constant 0 : index
    %c0_8 = arith.constant 0 : index
    %6 = vector.load %arg2[%c0_6, %c0_7, %c0_8] : memref<2x1x3xf32, #tpu.memory_space<vmem>>, vector<2x1x3xf32>
    %7 = vector.shape_cast %6 : vector<2x1x3xf32> to vector<2x3xf32>
    %8 = arith.addf %5, %7 : vector<2x3xf32>
    %cst_9 = arith.constant 0.000000e+00 : f32
    %9 = vector.broadcast %cst_9 : f32 to vector<2x3xf32>
    %10 = arith.maximumf %8, %9 : vector<2x3xf32>
    %c0_10 = arith.constant 0 : index
    %c0_11 = arith.constant 0 : index
    %11 = vector.load %arg4[%c0_10, %c0_11] : memref<3x16xf32, #tpu.memory_space<vmem>>, vector<3x16xf32>
    %cst_12 = arith.constant dense<0.000000e+00> : vector<2x16xf32>
    %12 = tpu.matmul %10, %11, %cst_12 {dimension_numbers = #tpu.dot_dimension_numbers<[1], [0], [0], [1], [0, 0, 1, 1], [], []>} : vector<2x3xf32>, vector<3x16xf32>, vector<2x16xf32> -> vector<2x16xf32>
    %13 = vector.extract_strided_slice %12 {offsets = [0, 0], sizes = [2, 8], strides = [1, 1]} : vector<2x16xf32> to vector<2x8xf32>
    %14 = vector.shape_cast %13 : vector<2x8xf32> to vector<2x8x1xf32>
    %15 = vector.extract_strided_slice %12 {offsets = [0, 8], sizes = [2, 8], strides = [1, 1]} : vector<2x16xf32> to vector<2x8xf32>
    %16 = vector.shape_cast %15 : vector<2x8xf32> to vector<2x8x1xf32>
    %c0_13 = arith.constant 0 : index
    %c0_14 = arith.constant 0 : index
    %c0_15 = arith.constant 0 : index
    %17 = vector.load %arg1[%c0_13, %c0_14, %c0_15] : memref<2x8x256xf32, #tpu.memory_space<vmem>>, vector<2x8x256xf32>
    %18 = vector.broadcast %14 : vector<2x8x1xf32> to vector<2x8x256xf32>
    %19 = arith.mulf %18, %17 : vector<2x8x256xf32>
    %20 = vector.broadcast %16 : vector<2x8x1xf32> to vector<2x8x256xf32>
    %21 = arith.addf %19, %20 : vector<2x8x256xf32>
    %c0_16 = arith.constant 0 : index
    %c0_17 = arith.constant 0 : index
    %c0_18 = arith.constant 0 : index
    %22 = vector.load %arg5[%c0_16, %c0_17, %c0_18] : memref<2x8x256xf32, #tpu.memory_space<vmem>>, vector<2x8x256xf32>
    tpu.vector_store %arg5[%c0_16, %c0_17, %c0_18], %21 {strides = array<i32>} : memref<2x8x256xf32, #tpu.memory_space<vmem>>, vector<2x8x256xf32>,
    return
  }
  func.func @transform_0(%arg0: i32) -> (i32, i32, i32) {
    %c0_i32 = arith.constant 0 : i32
    %c0_i32_0 = arith.constant 0 : i32
    %c0_i32_1 = arith.constant 0 : i32
    return %arg0, %c0_i32, %c0_i32_0 : i32, i32, i32
  }
  func.func @transform_1(%arg0: i32) -> (i32, i32, i32) {
    %c0_i32 = arith.constant 0 : i32
    %c0_i32_0 = arith.constant 0 : i32
    %c0_i32_1 = arith.constant 0 : i32
    return %arg0, %c0_i32, %c0_i32_0 : i32, i32, i32
  }
  func.func @transform_2(%arg0: i32) -> (i32, i32) {
    %c0_i32 = arith.constant 0 : i32
    %c0_i32_0 = arith.constant 0 : i32
    %c0_i32_1 = arith.constant 0 : i32
    return %c0_i32, %c0_i32_0 : i32, i32
  }
  func.func @transform_3(%arg0: i32) -> (i32, i32) {
    %c0_i32 = arith.constant 0 : i32
    %c0_i32_0 = arith.constant 0 : i32
    %c0_i32_1 = arith.constant 0 : i32
    return %c0_i32, %c0_i32_0 : i32, i32
  }
  func.func @transform_4(%arg0: i32) -> (i32, i32, i32) {
    %c0_i32 = arith.constant 0 : i32
    %c0_i32_0 = arith.constant 0 : i32
    %c0_i32_1 = arith.constant 0 : i32
    return %arg0, %c0_i32, %c0_i32_0 : i32, i32, i32
  }
}

</mosaic_0001>

<llo_original>
// kernel: daft_forward.1
$region0: #{daft_forward.1}
  #allocation0 [shape = 'u32[]', space=smem, size = 0x4, offset = 0x4, fixed_abs, tag = 'smem constant byte address 0x4 - core index']
  #allocation1 [shape = 'u32[72,128]{1,0:T(1,128)}', space=vmem, size = 0x9000, scoped, tag = 'internal scratch']
  %s0 = inlined_call_operand.vmem [shape: f32[2,8,256], index: 0, kind: input, shape index: {}]
  %s1 = inlined_call_operand.vmem [shape: f32[2,1,3], index: 1, kind: input, shape index: {}]
  %s2 = inlined_call_operand.vmem [shape: f32[8,3], index: 2, kind: input, shape index: {}]
  %s3 = inlined_call_operand.vmem [shape: f32[3,16], index: 3, kind: input, shape index: {}]
  %s4 = inlined_call_operand.vmem [shape: f32[2,8,256], index: 4, kind: output, shape index: {}]
  %s5 = sld [smem:[#allocation0]]
  $region26: #{daft_forward.1} parent=0
    _
  %s7 = ssub.s32 1, %s5
  %s8 = scalar_select 0, %s7, %s5
  // Predicated region
  $region2: #{daft_forward.1} parent=0 // pred_check
    _
  $region3: #{daft_forward.1} parent=0 // pred_check_branch
    %10 = sbr.rel (0) target = $region5
  $region4: #{daft_forward.1} parent=0 // pred_region
    _
  $region5: #{daft_forward.1} parent=0 // pred_fallthru
    _
  // Predicated region
  $region6: #{daft_forward.1} parent=0 // pred_check
    _
  $region7: #{daft_forward.1} parent=0 // pred_check_branch
    %12 = sbr.rel (0) target = $region9
  $region8: #{daft_forward.1} parent=0 // pred_region
    _
  $region9: #{daft_forward.1} parent=0 // pred_fallthru
    _
  // Predicated region
  $region10: #{daft_forward.1} parent=0 // pred_check
    _
  $region11: #{daft_forward.1} parent=0 // pred_check_branch
    %14 = sbr.rel (0) target = $region13
  $region12: #{daft_forward.1} parent=0 // pred_region
    _
  $region13: #{daft_forward.1} parent=0 // pred_fallthru
    _
  // Predicated region
  $region14: #{daft_forward.1} parent=0 // pred_check
    _
  $region15: #{daft_forward.1} parent=0 // pred_check_branch
    %16 = sbr.rel (0) target = $region17
  $region16: #{daft_forward.1} parent=0 // pred_region
    _
  $region17: #{daft_forward.1} parent=0 // pred_fallthru
    _
  %v17 = vld [vmem:[%s0] sm:$0xff]
  %v18 = vld [vmem:[%s0 + $0x8] sm:$0xff]
  %v19 = vld [vmem:[%s0 + $0x10] sm:$0xff]
  %v20 = vld [vmem:[%s0 + $0x18] sm:$0xff]
  %v21 = vadd.f32 %v17, %v18
  %22 = vadd.xlane.f32.xlu0 %v21
  %v23 = vpop.xlane.xlu0 %22
  %v24 = vadd.f32 %v19, %v20
  %25 = vadd.xlane.f32.xlu0 %v24
  %v26 = vpop.xlane.xlu0 %25
  %v27 = vmul.f32 %v23, 0.00390625
  %v28 = vmul.f32 %v26, 0.00390625
  %v29 = vld [vmem:[%s2] sm:$0xff]
  %v30 = vld [vmem:[%s1] sm:$0x1]
  %v31 = vld [vmem:[%s1 + $0x1] sm:$0x1]
  %v34 = vlaneseq
  %v35 = vand.u32 %v34, 127
  %v36 = vperm.slane %v27, %v35
  %v37 = vperm.slane %v28, %v35
  %vm38 = vcmask 1041409
  %v39 = vsel %vm38, %v37, %v36
  %42 = vst [vmem:[#allocation1] ss:$9 sm:$0xff] %v30
  %s43 = scalar_lea.vmem [#allocation1], 1
  %44 = vst [vmem:[%s43] ss:$9 sm:$0xff] %v31
  %v45 = vld [vmem:[#allocation1] sm:$0xff]
  %vm47 = vcmask 64512
  %v48 = vsel %vm47, %v39, 0
  %50 = vmatpush.msra.mxu0 0.0
  %51 = vmatpush.msra.mxu0 0.0
  %52 = vmatpush.msra.mxu0 0.0
  %53 = vmatpush.msra.mxu0 0.0
  %54 = vmatpush.msra.mxu0 0.0
  %55 = vmatpush.msra.mxu0 0.0
  %56 = vmatpush.msra.mxu0 0.0
  %57 = vmatpush.msra.mxu0 0.0
  %58 = vmatpush.msra.mxu0 0.0
  %59 = vmatpush.msra.mxu0 0.0
  %60 = vmatpush.msra.mxu0 0.0
  %61 = vmatpush.msra.mxu0 0.0
  %62 = vmatpush.msra.mxu0 0.0
  %63 = vmatpush.msra.mxu0 0.0
  %64 = vmatpush.msra.mxu0 0.0
  %65 = vmatpush.msra.mxu0 %v29
  %66 = vmatmul.f32.gmra.mxu0 %v48
  %v67 = vpop.f32.mrf.mxu0
  %v68 = vadd.f32 %v45, %v67
  %69 = vdwg.mxu0
  %v70 = vmax.f32 %v68, 0.0
  %v71 = vld [vmem:[%s3] sm:$0x7]
  %vm72 = vcmask 23552
  %v74 = vsel %vm72, %v70, 0
  %vm76 = vcmask 1042432
  %v78 = vsel %vm76, %v71, 0
  %80 = vmatpush.msra.mxu0 0.0
  %81 = vmatpush.msra.mxu0 0.0
  %82 = vmatpush.msra.mxu0 0.0
  %83 = vmatpush.msra.mxu0 0.0
  %84 = vmatpush.msra.mxu0 0.0
  %85 = vmatpush.msra.mxu0 0.0
  %86 = vmatpush.msra.mxu0 0.0
  %87 = vmatpush.msra.mxu0 0.0
  %88 = vmatpush.msra.mxu0 0.0
  %89 = vmatpush.msra.mxu0 0.0
  %90 = vmatpush.msra.mxu0 0.0
  %91 = vmatpush.msra.mxu0 0.0
  %92 = vmatpush.msra.mxu0 0.0
  %93 = vmatpush.msra.mxu0 0.0
  %94 = vmatpush.msra.mxu0 0.0
  %95 = vmatpush.msra.mxu0 %v78
  %96 = vmatmul.f32.gmra.mxu0 %v74
  %v97 = vpop.f32.mrf.mxu0
  %v98 = vadd.f32 0.0, %v97
  %99 = vdwg.mxu0
  %v100 = vperm.slane %v98, 0
  %v101 = vlaneseq
  %v102 = vshrl.u32 %v101, 7
  %104 = vset.pattern.permute.xlu0 %v102
  %105 = vperm.xlu0 %104, %v100
  %v106 = vpop.permute.xlu0 %105
  %v107 = vperm.slane %v98, 1
  %v108 = vlaneseq
  %v109 = vshrl.u32 %v108, 7
  %111 = vset.pattern.permute.xlu0 %v109
  %112 = vperm.xlu0 %111, %v107
  %v113 = vpop.permute.xlu0 %112
  %v114 = vlaneseq
  %v115 = vshrl.u32 %v114, 7
  %v116 = vadd.s32 %v115, 8
  %117 = vset.pattern.permute.xlu0 %v116
  %118 = vperm.xlu0 %117, %v100
  %v119 = vpop.permute.xlu0 %118
  %v120 = vlaneseq
  %v121 = vshrl.u32 %v120, 7
  %v122 = vadd.s32 %v121, 8
  %123 = vset.pattern.permute.xlu0 %v122
  %124 = vperm.xlu0 %123, %v107
  %v125 = vpop.permute.xlu0 %124
  %v126 = vmul.f32 %v106, %v17
  %v127 = vmul.f32 %v106, %v18
  %v128 = vmul.f32 %v113, %v19
  %v129 = vmul.f32 %v113, %v20
  %v130 = vadd.f32 %v126, %v119
  %v131 = vadd.f32 %v127, %v119
  %v132 = vadd.f32 %v128, %v125
  %v133 = vadd.f32 %v129, %v125
  %134 = vst [vmem:[%s4] sm:$0xff] %v130
  %135 = vst [vmem:[%s4 + $0x8] sm:$0xff] %v131
  %136 = vst [vmem:[%s4 + $0x10] sm:$0xff] %v132
  %137 = vst [vmem:[%s4 + $0x18] sm:$0xff] %v133
  // Predicated region
  $region18: #{daft_forward.1} parent=0 // pred_check
    _
  $region19: #{daft_forward.1} parent=0 // pred_check_branch
    %139 = sbr.rel (0) target = $region21
  $region20: #{daft_forward.1} parent=0 // pred_region
    _
  $region21: #{daft_forward.1} parent=0 // pred_fallthru
    _
  // Predicated region
  $region22: #{daft_forward.1} parent=0 // pred_check
    _
  $region23: #{daft_forward.1} parent=0 // pred_check_branch
    %141 = sbr.rel (0) target = $region25
  $region24: #{daft_forward.1} parent=0 // pred_region
    _
  $region25: #{daft_forward.1} parent=0 // pred_fallthru
    _

</llo_original>
